<compile_context>
chip_gen: v7x
topology: tpu7x:2x2x1
jax: 0.10.0
libtpu: 0.0.40
codegen_flags: <defaults>
</compile_context>

<pallas_src>
import jax
import jax.numpy as jnp
from jax.experimental import pallas as pl
from jax.experimental.pallas import tpu as pltpu


def _skip_kernel(w_ref, b_ref, x_ref, y_ref, o_ref):
    # w_ref: (C, C)    Conv1d weight (kernel_size=1, squeezed), VMEM-resident
    # b_ref: (C, 1)    bias, broadcast over the T (lane) axis
    # x_ref: (C, Tt)   input block for one (batch, T-tile) grid point
    # y_ref: (C, Tt)   residual block
    # o_ref: (C, Tt)   output block
    acc = jnp.dot(w_ref[...], x_ref[...], preferred_element_type=jnp.float32)
    o_ref[...] = (acc + b_ref[...] + y_ref[...]).astype(o_ref.dtype)


def _choose_t_tile(T, cap=1024):
    """Largest multiple of 128 (<= cap) that evenly divides T, else full T."""
    best = None
    tt = 128
    while tt <= min(T, cap):
        if T % tt == 0:
            best = tt
        tt += 128
    return best if best is not None else T


def skip_forward(x, y, weight, bias):
    """Equivalent of Skip.forward.

    Args:
      x:      (N, C, T) float32  -- PyTorch NCT layout
      y:      (N, C, T) float32
      weight: (C, C)    float32  -- Conv1d weight squeezed from (C, C, 1)
      bias:   (C,)      float32
    Returns:
      (x, conv(x) + y), both shaped (N, C, T)
    """
    N, C, T = x.shape
    Tt = _choose_t_tile(T)
    grid = (N, T // Tt)

    b2d = bias.reshape(C, 1)

    out = pl.pallas_call(
        _skip_kernel,
        out_shape=jax.ShapeDtypeStruct((N, C, T), x.dtype),
        grid=grid,
        in_specs=[
            # Weight / bias: constant index_map -> fetched once, stay resident.
            pl.BlockSpec((C, C), lambda n, t: (0, 0)),
            pl.BlockSpec((C, 1), lambda n, t: (0, 0)),
            # x / y: one (1, C, Tt) tile per grid point; leading dim squeezed.
            pl.BlockSpec((None, C, Tt), lambda n, t: (n, 0, t)),
            pl.BlockSpec((None, C, Tt), lambda n, t: (n, 0, t)),
        ],
        out_specs=pl.BlockSpec((None, C, Tt), lambda n, t: (n, 0, t)),
        compiler_params=pltpu.CompilerParams(
            # No reduction axis: both grid dims are independent -> megacore
            # sharding on v7x.
            dimension_semantics=("parallel", "parallel"),
            vmem_limit_bytes=32 * 1024 * 1024,
        ),
    )(weight, b2d, x, y)

    return x, out


if __name__ == "__main__":
    key = jax.random.PRNGKey(0)
    k_x, k_y, k_w, k_b = jax.random.split(key, 4)

    N, C, T = 2, 8, 16          # batch, channels (l), sequence length
    x = jax.random.normal(k_x, (N, C, T), dtype=jnp.float32)
    y = jax.random.normal(k_y, (N, C, T), dtype=jnp.float32)

    # Deterministic Conv1d(l, l, 1) parameters (synthetic init).
    weight = jax.random.normal(k_w, (C, C), dtype=jnp.float32) * 0.1
    bias = jax.random.normal(k_b, (C,), dtype=jnp.float32) * 0.1

    x_out, conv_out = skip_forward(x, y, weight, bias)
    jax.block_until_ready((x_out, conv_out))

    # Reference check (plain JAX einsum == Conv1d with kernel_size 1).
    ref = jnp.einsum("oc,nct->not", weight, x) + bias[None, :, None] + y
    assert jnp.allclose(conv_out, ref, atol=1e-5, rtol=1e-5)
    assert jnp.allclose(x_out, x)

    print("KERNEL_OK")
</pallas_src>

<mosaic_0001>
module attributes {stable_mosaic.version = 11 : i64} {
  func.func @_skip_kernel(%arg0: i32, %arg1: i32, %arg2: memref<8x8xf32, #tpu.memory_space<vmem>>, %arg3: memref<8x1xf32, #tpu.memory_space<vmem>>, %arg4: memref<1x8x16xf32, #tpu.memory_space<vmem>>, %arg5: memref<1x8x16xf32, #tpu.memory_space<vmem>>, %arg6: memref<1x8x16xf32, #tpu.memory_space<vmem>>) attributes {dimension_semantics = [#tpu.dimension_semantics<parallel>, #tpu.dimension_semantics<parallel>], iteration_bounds = array<i64: 2, 1>, scalar_prefetch = 0 : i64, scratch_operands = 0 : i64, tpu.core_type = #tpu.core_type<tc>, window_params = [{pipeline_mode = #tpu.pipeline_mode<synchronous>, transform_indices = @transform_0, window_bounds = array<i64: 8, 8>}, {pipeline_mode = #tpu.pipeline_mode<synchronous>, transform_indices = @transform_1, window_bounds = array<i64: 8, 1>}, {transform_indices = @transform_2, window_bounds = array<i64: 1, 8, 16>}, {transform_indices = @transform_3, window_bounds = array<i64: 1, 8, 16>}, {transform_indices = @transform_4, window_bounds = array<i64: 1, 8, 16>}]} {
    %c0 = arith.constant 0 : index
    %c0_0 = arith.constant 0 : index
    %0 = vector.load %arg2[%c0, %c0_0] : memref<8x8xf32, #tpu.memory_space<vmem>>, vector<8x8xf32>
    %c0_1 = arith.constant 0 : index
    %c0_2 = arith.constant 0 : index
    %c0_3 = arith.constant 0 : index
    %1 = vector.load %arg4[%c0_1, %c0_2, %c0_3] : memref<1x8x16xf32, #tpu.memory_space<vmem>>, vector<1x8x16xf32>
    %2 = vector.shape_cast %1 : vector<1x8x16xf32> to vector<8x16xf32>
    %cst = arith.constant dense<0.000000e+00> : vector<8x16xf32>
    %3 = tpu.matmul %0, %2, %cst {dimension_numbers = #tpu.dot_dimension_numbers<[1], [0], [0], [1], [0, 0, 1, 1], [], []>} : vector<8x8xf32>, vector<8x16xf32>, vector<8x16xf32> -> vector<8x16xf32>
    %c0_4 = arith.constant 0 : index
    %c0_5 = arith.constant 0 : index
    %4 = vector.load %arg3[%c0_4, %c0_5] : memref<8x1xf32, #tpu.memory_space<vmem>>, vector<8x1xf32>
    %5 = vector.broadcast %4 : vector<8x1xf32> to vector<8x16xf32>
    %6 = arith.addf %3, %5 : vector<8x16xf32>
    %c0_6 = arith.constant 0 : index
    %c0_7 = arith.constant 0 : index
    %c0_8 = arith.constant 0 : index
    %7 = vector.load %arg5[%c0_6, %c0_7, %c0_8] : memref<1x8x16xf32, #tpu.memory_space<vmem>>, vector<1x8x16xf32>
    %8 = vector.shape_cast %7 : vector<1x8x16xf32> to vector<8x16xf32>
    %9 = arith.addf %6, %8 : vector<8x16xf32>
    %c0_9 = arith.constant 0 : index
    %c0_10 = arith.constant 0 : index
    %c0_11 = arith.constant 0 : index
    %10 = vector.load %arg6[%c0_9, %c0_10, %c0_11] : memref<1x8x16xf32, #tpu.memory_space<vmem>>, vector<1x8x16xf32>
    %11 = vector.shape_cast %10 : vector<1x8x16xf32> to vector<8x16xf32>
    %12 = vector.shape_cast %9 : vector<8x16xf32> to vector<1x8x16xf32>
    tpu.vector_store %arg6[%c0_9, %c0_10, %c0_11], %12 {strides = array<i32>} : memref<1x8x16xf32, #tpu.memory_space<vmem>>, vector<1x8x16xf32>,
    return
  }
  func.func @transform_0(%arg0: i32, %arg1: i32) -> (i32, i32) {
    %c0_i32 = arith.constant 0 : i32
    %c0_i32_0 = arith.constant 0 : i32
    %c0_i32_1 = arith.constant 0 : i32
    return %c0_i32, %c0_i32_0 : i32, i32
  }
  func.func @transform_1(%arg0: i32, %arg1: i32) -> (i32, i32) {
    %c0_i32 = arith.constant 0 : i32
    %c0_i32_0 = arith.constant 0 : i32
    %c0_i32_1 = arith.constant 0 : i32
    return %c0_i32, %c0_i32_0 : i32, i32
  }
  func.func @transform_2(%arg0: i32, %arg1: i32) -> (i32, i32, i32) {
    %c0_i32 = arith.constant 0 : i32
    %c0_i32_0 = arith.constant 0 : i32
    return %arg0, %c0_i32, %arg1 : i32, i32, i32
  }
  func.func @transform_3(%arg0: i32, %arg1: i32) -> (i32, i32, i32) {
    %c0_i32 = arith.constant 0 : i32
    %c0_i32_0 = arith.constant 0 : i32
    return %arg0, %c0_i32, %arg1 : i32, i32, i32
  }
  func.func @transform_4(%arg0: i32, %arg1: i32) -> (i32, i32, i32) {
    %c0_i32 = arith.constant 0 : i32
    %c0_i32_0 = arith.constant 0 : i32
    return %arg0, %c0_i32, %arg1 : i32, i32, i32
  }
}

</mosaic_0001>

<llo_original>
// kernel: tpu_custom_call.1
$region0: #{tpu_custom_call.1}
  #allocation0 [shape = 'u32[]', space=smem, size = 0x4, offset = 0x4, fixed_abs, tag = 'smem constant byte address 0x4 - core index']
  #allocation1 [shape = 'u32[144,128]{1,0:T(1,128)}', space=vmem, size = 0x12000, scoped, tag = 'internal scratch']
  %s0 = inlined_call_operand.hbm [shape: f32[8,8], index: 0, kind: input, shape index: {}]
  %s1 = inlined_call_operand.vmem [shape: f32[8,1], index: 1, kind: input, shape index: {}]
  %s2 = inlined_call_operand.vmem [shape: f32[2,8,16], index: 2, kind: input, shape index: {}]
  %s3 = inlined_call_operand.hbm [shape: f32[2,8,16], index: 3, kind: input, shape index: {}]
  %s4 = inlined_call_operand.hbm [shape: f32[2,8,16], index: 4, kind: output, shape index: {}]
  %s5 = sld [smem:[#allocation0]]
  $region57: #{tpu_custom_call.1} parent=0
    _
  %s7 = ssub.s32 1, %s5
  %s8 = scalar_select 0, %s7, %s5
  $region1: #{tpu_custom_call.1} parent=0
    #allocation2 [shape = 'u8[4096]{0}', space=vmem, size = 0x1000, scoped, tag = 'input window, operand 0, single buffered']
    #allocation3 [shape = 's32[2]{0}', space=sflag, size = 0x8, scoped, tag = 'scoped memory for tpu_custom_call.1']
    #allocation4 [shape = 's32[2]{0}', space=sflag, size = 0x8, scoped, tag = 'scoped memory for tpu_custom_call.1']
    #allocation5 [shape = 'u8[8192]{0}', space=vmem, size = 0x2000, scoped, tag = 'input window, operand 3']
    #allocation6 [shape = 's32[2]{0}', space=sflag, size = 0x8, scoped, tag = 'scoped memory for tpu_custom_call.1']
    #allocation7 [shape = 'u8[8192]{0}', space=vmem, size = 0x2000, scoped, tag = 'output window, operand 0']
    %9 = vsyncpa [#allocation3], 0
    %10 = vsyncpa [#allocation6], 0
    %s11 = scalar_lea.sflag [#allocation6], 1
    %12 = vsyncpa %s11, 0
    %13 = vsyncpa [#allocation4], 0
    %s14 = scalar_lea.sflag [#allocation4], 1
    %15 = vsyncpa %s14, 0
    loop: start=0, step=1, limit=4
    $region2: #{tpu_custom_call.1} parent=1 // loop_pre_header
      _
    $region3: #{tpu_custom_call.1} parent=1 // loop_header
      %s17 = sphi 0, %s21
      %p18 = scmp.ge.s32.totalorder %s17, 4
      %s24 = sphi 0, %s36
      %s25 = sphi 0, %s32
      %s26 = sphi 0, %s24
      %s27 = sphi 0, %s25
      %s28 = sphi 0, %s26
      %s29 = sphi 0, %s27
      %s37 = sphi 0, %s37
      %s39 = sphi 0, %s37
      %s40 = sphi 0, %s39
      %s54 = sphi 0, %s40
      %s58 = sphi 0, %s58
      %s60 = sphi 0, %s58
      %s61 = sphi 0, %s60
      %s75 = sphi 0, %s61
      %s83 = sphi 0, %s85
      %s86 = sphi 0, %s83
      %s87 = sphi 0, %s86
      %s103 = sphi 0, %s87
      %s111 = sphi 0, %s113
      %s114 = sphi 0, %s111
      %s115 = sphi 0, %s114
      %s131 = sphi 0, %s115
      %s139 = sphi 0, %s141
      %s142 = sphi 0, %s139
      %s143 = sphi 0, %s142
      %s159 = sphi 0, %s143
    $region4: #{tpu_custom_call.1} parent=1 // loop_header_branch
      %20 = sbr.rel (%p18) target = $region8
    $region5: #{tpu_custom_call.1} parent=1 // loop_body
      %s22 = ssub.s32 %s17, 1
      %s23 = ssub.s32 %s17, 2
      %s30 = sadd.s32 1, %s25
      %p31 = scmp.ge.s32.totalorder %s30, 1
      %s32 = scalar_select %p31, 0, %s30
      %s33 = sadd.s32 1, %s24
      %s34 = scalar_select %p31, %s33, %s24
      %p35 = scmp.ge.s32.totalorder %s34, 2
      %s36 = scalar_select %p35, 0, %s34
      %s38 = sadd.s32 %s37, 1
      %p41 = scmp.eq.s32.totalorder %s17, 1
      %p42 = scmp.ne.s32.totalorder %s37, %s39
      %p43 = scmp.eq.s32.totalorder %s17, 0
      %p44 = por %p42, %p43
      %p45 = scmp.ne.s32.totalorder %s37, %s39
      %p46 = scmp.eq.s32.totalorder %s22, 1
      %p47 = por %p45, %p46
      %p48 = scmp.ne.s32.totalorder %s39, %s40
      %p49 = scmp.eq.s32.totalorder %s22, 0
      %p50 = por %p48, %p49
      %p51 = scmp.ne.s32.totalorder %s39, %s40
      %p52 = scmp.eq.s32.totalorder %s23, 1
      %p53 = por %p51, %p52
      %p55 = scmp.ne.s32.totalorder %s40, %s54
      %p56 = scmp.eq.s32.totalorder %s23, 0
      %p57 = por %p55, %p56
      %s59 = sadd.s32 %s58, 1
      %p62 = scmp.eq.s32.totalorder %s17, 1
      %p63 = scmp.ne.s32.totalorder %s58, %s60
      %p64 = scmp.eq.s32.totalorder %s17, 0
      %p65 = por %p63, %p64
      %p66 = scmp.ne.s32.totalorder %s58, %s60
      %p67 = scmp.eq.s32.totalorder %s22, 1
      %p68 = por %p66, %p67
      %p69 = scmp.ne.s32.totalorder %s60, %s61
      %p70 = scmp.eq.s32.totalorder %s22, 0
      %p71 = por %p69, %p70
      %p72 = scmp.ne.s32.totalorder %s60, %s61
      %p73 = scmp.eq.s32.totalorder %s23, 1
      %p74 = por %p72, %p73
      %p76 = scmp.ne.s32.totalorder %s61, %s75
      %p77 = scmp.eq.s32.totalorder %s23, 0
      %p78 = por %p76, %p77
      %s79 = ssub.s32 %s24, %s36
      %s80 = ssub.s32 %s25, %s32
      %s81 = sor.u32 %s79, %s80
      %p82 = scmp.eq.s32.totalorder %s81, 0
      %s84 = sadd.s32 %s83, 1
      %s85 = scalar_select %p82, %s83, %s84
      %p88 = pneg %p82
      %p89 = scmp.eq.s32.totalorder %s17, 1
      %p90 = por %p88, %p89
      %p91 = scmp.ne.s32.totalorder %s83, %s86
      %p92 = scmp.eq.s32.totalorder %s17, 0
      %p93 = por %p91, %p92
      %p94 = scmp.ne.s32.totalorder %s83, %s86
      %p95 = scmp.eq.s32.totalorder %s22, 1
      %p96 = por %p94, %p95
      %p97 = scmp.ne.s32.totalorder %s86, %s87
      %p98 = scmp.eq.s32.totalorder %s22, 0
      %p99 = por %p97, %p98
      %p100 = scmp.ne.s32.totalorder %s86, %s87
      %p101 = scmp.eq.s32.totalorder %s23, 1
      %p102 = por %p100, %p101
      %p104 = scmp.ne.s32.totalorder %s87, %s103
      %p105 = scmp.eq.s32.totalorder %s23, 0
      %p106 = por %p104, %p105
      %s107 = ssub.s32 %s24, %s36
      %s108 = ssub.s32 %s25, %s32
      %s109 = sor.u32 %s107, %s108
      %p110 = scmp.eq.s32.totalorder %s109, 0
      %s112 = sadd.s32 %s111, 1
      %s113 = scalar_select %p110, %s111, %s112
      %p116 = pneg %p110
      %p117 = scmp.eq.s32.totalorder %s17, 1
      %p118 = por %p116, %p117
      %p119 = scmp.ne.s32.totalorder %s111, %s114
      %p120 = scmp.eq.s32.totalorder %s17, 0
      %p121 = por %p119, %p120
      %p122 = scmp.ne.s32.totalorder %s111, %s114
      %p123 = scmp.eq.s32.totalorder %s22, 1
      %p124 = por %p122, %p123
      %p125 = scmp.ne.s32.totalorder %s114, %s115
      %p126 = scmp.eq.s32.totalorder %s22, 0
      %p127 = por %p125, %p126
      %p128 = scmp.ne.s32.totalorder %s114, %s115
      %p129 = scmp.eq.s32.totalorder %s23, 1
      %p130 = por %p128, %p129
      %p132 = scmp.ne.s32.totalorder %s115, %s131
      %p133 = scmp.eq.s32.totalorder %s23, 0
      %p134 = por %p132, %p133
      %s135 = ssub.s32 %s24, %s36
      %s136 = ssub.s32 %s25, %s32
      %s137 = sor.u32 %s135, %s136
      %p138 = scmp.eq.s32.totalorder %s137, 0
      %s140 = sadd.s32 %s139, 1
      %s141 = scalar_select %p138, %s139, %s140
      %p144 = pneg %p138
      %p145 = scmp.eq.s32.totalorder %s17, 1
      %p146 = por %p144, %p145
      %p147 = scmp.ne.s32.totalorder %s139, %s142
      %p148 = scmp.eq.s32.totalorder %s17, 0
      %p149 = por %p147, %p148
      %p150 = scmp.ne.s32.totalorder %s139, %s142
      %p151 = scmp.eq.s32.totalorder %s22, 1
      %p152 = por %p150, %p151
      %p153 = scmp.ne.s32.totalorder %s142, %s143
      %p154 = scmp.eq.s32.totalorder %s22, 0
      %p155 = por %p153, %p154
      %p156 = scmp.ne.s32.totalorder %s142, %s143
      %p157 = scmp.eq.s32.totalorder %s23, 1
      %p158 = por %p156, %p157
      %p160 = scmp.ne.s32.totalorder %s143, %s159
      %p161 = scmp.eq.s32.totalorder %s23, 0
      %p162 = por %p160, %p161
      %p163 = scmp.le.s32.totalorder 1, %s17
      %p164 = scmp.lt.s32.totalorder %s17, 3
      %p165 = pnand %p163, %p164
      %p166 = pneg %p165
      // Predicated region
      $region9: #{tpu_custom_call.1} parent=5 // pred_check
        _
      $region10: #{tpu_custom_call.1} parent=5 // pred_check_branch
        %168 = sbr.rel (%p165) target = $region12
      $region11: #{tpu_custom_call.1} parent=5 // pred_region
        %s169 = ssub.s32 %s17, 1
        // Predicated region
        $region13: #{tpu_custom_call.1} parent=11 // pred_check
          %p170 = pneg %p50
        $region14: #{tpu_custom_call.1} parent=11 // pred_check_branch
          %172 = sbr.rel (%p170) target = $region16
        $region15: #{tpu_custom_call.1} parent=11 // pred_region
          %s174 = ssub.s32 128, 128
          %175 = vsyncadd [#allocation3], %s174
          %s177 = sshll.u32 [#allocation2], 4
          %s178 = int_to_ptr.vmem [resolvable:$true] %s177
          %180 = dma.hbm_to_vmem [thread:$0]  %s0, 128, %s178, [#allocation3]
        $region16: #{tpu_custom_call.1} parent=11 // pred_fallthru
          _
        // Predicated region
        $region17: #{tpu_custom_call.1} parent=11 // pred_check
          %p181 = pneg %p71
        $region18: #{tpu_custom_call.1} parent=11 // pred_check_branch
          %183 = sbr.rel (%p181) target = $region20
        $region19: #{tpu_custom_call.1} parent=11 // pred_region
          _
        $region20: #{tpu_custom_call.1} parent=11 // pred_fallthru
          _
      $region12: #{tpu_custom_call.1} parent=5 // pred_fallthru
        _
      %p184 = scmp.lt.s32.totalorder %s17, 2
      // Predicated region
      $region21: #{tpu_custom_call.1} parent=5 // pred_check
        %p185 = pneg %p184
      $region22: #{tpu_custom_call.1} parent=5 // pred_check_branch
        %187 = sbr.rel (%p185) target = $region24
      $region23: #{tpu_custom_call.1} parent=5 // pred_region
        // Predicated region
        $region25: #{tpu_custom_call.1} parent=23 // pred_check
          %p188 = pneg %p93
        $region26: #{tpu_custom_call.1} parent=23 // pred_check_branch
          %190 = sbr.rel (%p188) target = $region28
        $region27: #{tpu_custom_call.1} parent=23 // pred_region
          %p191 = scmp.lt.s32.totalorder %s24, 1
          %s192 = scalar_select %p191, %s24, 1
          %p193 = scmp.lt.s32.totalorder %s25, 0
          %s194 = scalar_select %p193, %s25, 0
          %s195 = sadd.s32 %s194, %s192
          %s196 = smul.addr %s195, 8
          %s197 = scalar_lea.vmem %s2, %s196
        $region28: #{tpu_custom_call.1} parent=23 // pred_fallthru
          _
        // Predicated region
        $region29: #{tpu_custom_call.1} parent=23 // pred_check
          %p198 = pneg %p121
        $region30: #{tpu_custom_call.1} parent=23 // pred_check_branch
          %200 = sbr.rel (%p198) target = $region32
        $region31: #{tpu_custom_call.1} parent=23 // pred_region
          %s201 = sand.u32 %s111, 1
          %s202 = scalar_lea.sflag [#allocation6], %s201
          %s203 = sand.u32 %s111, 1
          %s204 = smul.addr %s203, 8
          %s205 = scalar_lea.vmem [#allocation5], %s204
          %s207 = ssub.s32 128, 128
          %208 = vsyncadd %s202, %s207
          %s209 = sadd.s32 %s25, %s24
          %s210 = smul.addr %s209, 128
          %s211 = scalar_lea.hbm %s3, %s210
          %s213 = sshll.u32 %s205, 4
          %s214 = int_to_ptr.vmem [resolvable:$true] %s213
          %216 = dma.hbm_to_vmem [thread:$0]  %s211, 128, %s214, %s202
        $region32: #{tpu_custom_call.1} parent=23 // pred_fallthru
          _
      $region24: #{tpu_custom_call.1} parent=5 // pred_fallthru
        _
      %p217 = scmp.le.s32.totalorder 1, %s17
      %p218 = scmp.lt.s32.totalorder %s17, 3
      %p219 = pnand %p217, %p218
      %p220 = pneg %p219
      // Predicated region
      $region33: #{tpu_custom_call.1} parent=5 // pred_check
        _
      $region34: #{tpu_custom_call.1} parent=5 // pred_check_branch
        %222 = sbr.rel (%p219) target = $region36
      $region35: #{tpu_custom_call.1} parent=5 // pred_region
        %s223 = ssub.s32 %s17, 1
        // Predicated region
        $region37: #{tpu_custom_call.1} parent=35 // pred_check
          %p224 = pneg %p50
        $region38: #{tpu_custom_call.1} parent=35 // pred_check_branch
          %226 = sbr.rel (%p224) target = $region40
        $region39: #{tpu_custom_call.1} parent=35 // pred_region
          %227 = dma.done [#allocation3], 128
        $region40: #{tpu_custom_call.1} parent=35 // pred_fallthru
          _
        %s228 = sand.u32 %s114, 1
        %s229 = scalar_lea.sflag [#allocation6], %s228
        %s230 = sand.u32 %s114, 1
        %s231 = smul.addr %s230, 8
        %s232 = scalar_lea.vmem [#allocation5], %s231
        // Predicated region
        $region41: #{tpu_custom_call.1} parent=35 // pred_check
          %p233 = pneg %p127
        $region42: #{tpu_custom_call.1} parent=35 // pred_check_branch
          %235 = sbr.rel (%p233) target = $region44
        $region43: #{tpu_custom_call.1} parent=35 // pred_region
          %236 = dma.done %s229, 128
        $region44: #{tpu_custom_call.1} parent=35 // pred_fallthru
          _
        %p237 = pneg %p50
        %p238 = pneg %p47
        %p239 = pneg %p71
        %p240 = pneg %p68
        %p241 = scmp.lt.s32.totalorder %s26, 1
        %s242 = scalar_select %p241, %s26, 1
        %p243 = scmp.lt.s32.totalorder %s27, 0
        %s244 = scalar_select %p243, %s27, 0
        %s245 = sadd.s32 %s244, %s242
        %s246 = smul.addr %s245, 8
        %s247 = scalar_lea.vmem %s2, %s246
        %p248 = pneg %p99
        %p249 = pneg %p96
        %s250 = sand.u32 %s114, 1
        %s251 = scalar_lea.sflag [#allocation6], %s250
        %s252 = sand.u32 %s114, 1
        %s253 = smul.addr %s252, 8
        %s254 = scalar_lea.vmem [#allocation5], %s253
        %p255 = pneg %p127
        %p256 = pneg %p124
        %p257 = pneg %p155
        %p258 = pneg %p152
        %s259 = sand.u32 %s142, 1
        %s260 = scalar_lea.sflag [#allocation4], %s259
        %s261 = sand.u32 %s142, 1
        %s262 = smul.addr %s261, 8
        %s263 = scalar_lea.vmem [#allocation7], %s262
        %p264 = scmp.lt.s32.totalorder %s26, 1
        %s265 = scalar_select %p264, %s26, 1
        %p266 = scmp.lt.s32.totalorder %s27, 0
        %s267 = scalar_select %p266, %s27, 0
        %s268 = sadd.s32 %s267, %s265
        %s269 = smul.addr %s268, 8
        %s270 = scalar_lea.vmem %s2, %s269
        %v271 = vld [vmem:[#allocation2] sm:$0xff]
        %v272 = vld [vmem:[%s270] sm:$0xff]
        %v273 = vld [vmem:[%s1] sm:$0xff]
        %275 = vset.pattern.permute.xlu0 0
        %276 = vperm.xlu0 %275, %v273
        %v277 = vpop.permute.xlu0 %276
        %vm279 = vcmask 64512
        %v281 = vsel %vm279, %v271, 0
        %283 = vmatprep.subr.mxu0 0.0
        %284 = vmatpush1.msra.mxu0 %v272
        %285 = vmatprep.subr.mxu0 0.0
        %286 = vmatpush1.msra.mxu0 0.0
        %287 = vmatprep.subr.mxu0 0.0
        %288 = vmatpush1.msra.mxu0 0.0
        %289 = vmatprep.subr.mxu0 0.0
        %290 = vmatpush1.msra.mxu0 0.0
        %291 = vmatprep.subr.mxu0 0.0
        %292 = vmatpush1.msra.mxu0 0.0
        %293 = vmatprep.subr.mxu0 0.0
        %294 = vmatpush1.msra.mxu0 0.0
        %295 = vmatprep.subr.mxu0 0.0
        %296 = vmatpush1.msra.mxu0 0.0
        %297 = vmatprep.subr.mxu0 0.0
        %298 = vmatpush1.msra.mxu0 0.0
        %299 = vmatprep.subr.mxu0 0.0
        %300 = vmatpush1.msra.mxu0 0.0
        %301 = vmatprep.subr.mxu0 0.0
        %302 = vmatpush1.msra.mxu0 0.0
        %303 = vmatprep.subr.mxu0 0.0
        %304 = vmatpush1.msra.mxu0 0.0
        %305 = vmatprep.subr.mxu0 0.0
        %306 = vmatpush1.msra.mxu0 0.0
        %307 = vmatprep.subr.mxu0 0.0
        %308 = vmatpush1.msra.mxu0 0.0
        %309 = vmatprep.subr.mxu0 0.0
        %310 = vmatpush1.msra.mxu0 0.0
        %311 = vmatprep.subr.mxu0 0.0
        %312 = vmatpush1.msra.mxu0 0.0
        %313 = vmatprep.subr.mxu0 0.0
        %314 = vmatpush1.msra.mxu0 0.0
        %315 = vmatprep.subr.mxu0 0.0
        %316 = vmatpush1.msra.mxu0 0.0
        %317 = vmatprep.subr.mxu0 0.0
        %318 = vmatpush1.msra.mxu0 0.0
        %319 = vmatprep.subr.mxu0 0.0
        %320 = vmatpush1.msra.mxu0 0.0
        %321 = vmatprep.subr.mxu0 0.0
        %322 = vmatpush1.msra.mxu0 0.0
        %323 = vmatprep.subr.mxu0 0.0
        %324 = vmatpush1.msra.mxu0 0.0
        %325 = vmatprep.subr.mxu0 0.0
        %326 = vmatpush1.msra.mxu0 0.0
        %327 = vmatprep.subr.mxu0 0.0
        %328 = vmatpush1.msra.mxu0 0.0
        %329 = vmatprep.subr.mxu0 0.0
        %330 = vmatpush1.msra.mxu0 0.0
        %331 = vmatprep.subr.mxu0 0.0
        %332 = vmatpush1.msra.mxu0 0.0
        %333 = vmatprep.subr.mxu0 0.0
        %334 = vmatpush1.msra.mxu0 0.0
        %335 = vmatprep.subr.mxu0 0.0
        %336 = vmatpush1.msra.mxu0 0.0
        %337 = vmatprep.subr.mxu0 0.0
        %338 = vmatpush1.msra.mxu0 0.0
        %339 = vmatprep.subr.mxu0 0.0
        %340 = vmatpush1.msra.mxu0 0.0
        %341 = vmatprep.subr.mxu0 0.0
        %342 = vmatpush1.msra.mxu0 0.0
        %343 = vmatprep.subr.mxu0 0.0
        %344 = vmatpush1.msra.mxu0 0.0
        %345 = vmatprep.subr.mxu0 0.0
        %346 = vmatpush1.msra.mxu0 0.0
        %347 = vmatprep.mubr.f32.mxu0 0.0
        %348 = vmatmul.mubr.f32.gmra.mrb[0].mxu0 %v281
        %v349 = vpop.f32.mrb[0].mxu0
        %v350 = vadd.f32 %v277, %v349
        %v351 = vpop.f32.mrb[0].mxu0
        %352 = vdwg.mxu0
        %v353 = vld [vmem:[%s232] sm:$0xff]
        %v354 = vadd.f32 %v350, %v353
        %vm355 = vcmask 130048
        %356 = vst.msk [vmem:[%s263] sm:$0xff] %vm355, %v354
        %s357 = sand.u32 %s142, 1
        %s358 = scalar_lea.sflag [#allocation4], %s357
        %s359 = sand.u32 %s142, 1
        %s360 = smul.addr %s359, 8
        %s361 = scalar_lea.vmem [#allocation7], %s360
        // Predicated region
        $region45: #{tpu_custom_call.1} parent=35 // pred_check
          %p362 = pneg %p152
        $region46: #{tpu_custom_call.1} parent=35 // pred_check_branch
          %364 = sbr.rel (%p362) target = $region48
        $region47: #{tpu_custom_call.1} parent=35 // pred_region
          %s366 = ssub.s32 128, 128
          %367 = vsyncadd %s358, %s366
          %s368 = sadd.s32 %s27, %s26
          %s369 = smul.addr %s368, 128
          %s370 = scalar_lea.hbm %s4, %s369
          %s372 = sshll.u32 %s361, 4
          %s373 = int_to_ptr.vmem [resolvable:$true] %s372
          %375 = dma.vmem_to_hbm [thread:$0]  %s373, 128, %s370, %s358
        $region48: #{tpu_custom_call.1} parent=35 // pred_fallthru
          _
      $region36: #{tpu_custom_call.1} parent=5 // pred_fallthru
        _
      %p376 = scmp.le.s32.totalorder 2, %s17
      // Predicated region
      $region49: #{tpu_custom_call.1} parent=5 // pred_check
        %p377 = pneg %p376
      $region50: #{tpu_custom_call.1} parent=5 // pred_check_branch
        %379 = sbr.rel (%p377) target = $region52
      $region51: #{tpu_custom_call.1} parent=5 // pred_region
        %s380 = ssub.s32 %s17, 2
        // Predicated region
        $region53: #{tpu_custom_call.1} parent=51 // pred_check
          %p381 = pneg %p158
        $region54: #{tpu_custom_call.1} parent=51 // pred_check_branch
          %383 = sbr.rel (%p381) target = $region56
        $region55: #{tpu_custom_call.1} parent=51 // pred_region
          %s384 = sand.u32 %s143, 1
          %s385 = scalar_lea.sflag [#allocation4], %s384
          %s386 = sand.u32 %s143, 1
          %s387 = smul.addr %s386, 8
          %s388 = scalar_lea.vmem [#allocation7], %s387
          %389 = dma.done %s385, 128
        $region56: #{tpu_custom_call.1} parent=51 // pred_fallthru
          _
      $region52: #{tpu_custom_call.1} parent=5 // pred_fallthru
        _
    $region6: #{tpu_custom_call.1} parent=1 // loop_footer
      %s21 = sadd.s32 1, %s17
    $region7: #{tpu_custom_call.1} parent=1 // loop_footer_branch
      %16 = sbr.rel target = $region3
    $region8: #{tpu_custom_call.1} parent=1 // loop_exit
      _
    %390 = vsyncpa [#allocation3], 1
    %s391 = scalar_lea.sflag [#allocation3], 1
    %392 = vsyncpa %s391, 1
    %393 = vsyncpa [#allocation6], 1
    %s394 = scalar_lea.sflag [#allocation6], 1
    %395 = vsyncpa %s394, 1
    %396 = vsyncpa [#allocation4], 1
    %s397 = scalar_lea.sflag [#allocation4], 1
    %398 = vsyncpa %s397, 1

</llo_original>
